<compile_context>
chip_gen: v6e
topology: v6e:2x2x1
jax: 0.10.0
libtpu: 0.0.40
codegen_flags: <defaults>
</compile_context>

<pallas_src>
import jax
import jax.numpy as jnp
from jax.experimental import pallas as pl
from jax.experimental.pallas import tpu as pltpu


def _round_up(x, m):
    return (x + m - 1) // m * m


# ---------------------------------------------------------------------------
# Grouper (MaskedQueryAndGroup, use_xyz=False, normalize_xyz=True) — JAX glue.
# ---------------------------------------------------------------------------
def _masked_query_and_group(query_xyz, support_xyz, query_mask, support_mask,
                            support_features, radius, nsample):
    # TODO(synk): at production point counts this materializes a [B,N1,ns,N2] hit
    # tensor and a [B,C,N1,ns] gather in HBM; replace with an index table shipped
    # via scalar prefetch + in-kernel DMA gather (memory_space=pl.ANY) for v5e-class
    # HBM bandwidth.  Fine at the toy sizes used here.
    diff = query_xyz[:, :, None, :] - support_xyz[:, None, :, :]          # [B,N1,N2,3]
    dist2 = jnp.sum(diff * diff, axis=-1)                                  # [B,N1,N2]
    within = (dist2 < radius * radius) & (support_mask[:, None, :] > 0)    # [B,N1,N2]
    within_i = within.astype(jnp.int32)
    cum = jnp.cumsum(within_i, axis=-1)                                    # [B,N1,N2]
    count = cum[..., -1]                                                   # [B,N1]
    first_valid = jnp.argmax(within_i, axis=-1).astype(jnp.int32)          # [B,N1]

    ks = jnp.arange(nsample, dtype=jnp.int32)
    # index of the k-th valid support point (in support index order)
    hit = (within[:, :, None, :] &
           (cum[:, :, None, :] == (ks[None, None, :, None] + 1))).astype(jnp.int32)
    idx_k = jnp.argmax(hit, axis=-1).astype(jnp.int32)                     # [B,N1,ns]
    has_k = count[:, :, None] > ks[None, None, :]                          # [B,N1,ns]
    idx = jnp.where(has_k, idx_k, first_valid[:, :, None])                 # [B,N1,ns]
    neighborhood_mask = has_k.astype(jnp.float32)                          # [B,N1,ns]

    grouped_xyz = jax.vmap(lambda s, i: s[i])(support_xyz, idx)            # [B,N1,ns,3]
    rel = (grouped_xyz - query_xyz[:, :, None, :]) / radius                # normalize_xyz
    relative_position = jnp.transpose(rel, (0, 3, 1, 2))                   # [B,3,N1,ns]
    grouped_feats = jax.vmap(lambda f, i: f[:, i])(support_features, idx)  # [B,C,N1,ns]
    return grouped_feats, relative_position, neighborhood_mask


# ---------------------------------------------------------------------------
# Pallas kernel: xyz position embedding * features, masked-average reduction,
# 1x1 conv (bf16 MXU matmul, BN scale pre-folded into the weight) + bias + ReLU.
# Grid = (batch, N1 tiles); N1 (query points) lives on the lane axis.
# ---------------------------------------------------------------------------
def _pospool_kernel(feat_ref, rel_ref, nmask_ref, qmask_ref, w_ref, bias_ref, out_ref):
    feats = feat_ref[0]        # (C, ns, TN)   lanes = TN query points
    rel = rel_ref[0]           # (3, ns, TN)
    nmask = nmask_ref[0]       # (ns, TN)
    qmask = qmask_ref[0]       # (1, TN)
    C, ns, tn = feats.shape

    # fill mask: valid neighbors, or all-ones for masked-out / padded query points.
    fm = nmask + (1.0 - qmask)                               # (ns, TN)

    # Fold the mask into the 3-channel position embedding BEFORE broadcasting to C
    # channels: (C + 3)*ns*TN multiplies instead of 2*C*ns*TN.
    rel_m = rel * fm[None, :, :]                             # (3, ns, TN)

    # 'xyz' position embedding: channel c = g*3 + d scaled by relative coord d.
    agg = (feats.reshape(C // 3, 3, ns, tn) * rel_m[None]).reshape(C, ns, tn)

    # 'avg' reduction over the neighborhood (sublane axis).
    ssum = jnp.sum(agg, axis=1)                              # (C, TN)
    denom = jnp.sum(fm, axis=0, keepdims=True)               # (1, TN)
    denom = jnp.maximum(denom, 1.0)                          # guard empty neighborhoods
    pooled = ssum * pl.reciprocal(denom, approx=True)        # EUP reciprocal (free slot)

    # 1x1 Conv1d (bias=False) with BN scale folded into the bf16 weight, then
    # fused BN bias + ReLU.
    y = jnp.dot(w_ref[...], pooled.astype(jnp.bfloat16),
                preferred_element_type=jnp.float32)          # (C_out, TN)
    y = y + bias_ref[...]
    out_ref[0] = jnp.maximum(y, 0.0)


def pospool_forward(query_xyz, support_xyz, query_mask, support_mask, support_features,
                    *, radius, nsample, w, bn_gamma, bn_beta, bn_mean, bn_var,
                    bn_eps=1e-5):
    B, N1, _ = query_xyz.shape
    C = support_features.shape[1]
    C_out = w.shape[0]
    ns = nsample

    feats, rel, nmask = _masked_query_and_group(
        query_xyz, support_xyz, query_mask, support_mask, support_features,
        radius, nsample)
    qmask = query_mask.astype(jnp.float32)                                 # [B,N1]

    # Fold BN (inference) scale into the conv weight (bf16 for the MXU); keep only
    # the bias as a per-channel add in the kernel.
    inv_std = 1.0 / jnp.sqrt(bn_var + bn_eps)
    scale = bn_gamma * inv_std                                             # (C_out,)
    w_scaled = (w * scale[:, None]).astype(jnp.bfloat16)                   # (C_out, C)
    bias = (bn_beta - bn_mean * scale).reshape(C_out, 1).astype(jnp.float32)

    # Re-layout: N1 on lanes, ns on sublanes; pad N1 to a multiple of 128.
    n_pad = _round_up(N1, 128)
    tile_n = max(t for t in (512, 256, 128) if n_pad % t == 0)
    pad = n_pad - N1
    feats_t = jnp.pad(jnp.transpose(feats, (0, 1, 3, 2)),
                      ((0, 0), (0, 0), (0, 0), (0, pad)))                  # [B,C,ns,Np]
    rel_t = jnp.pad(jnp.transpose(rel, (0, 1, 3, 2)),
                    ((0, 0), (0, 0), (0, 0), (0, pad)))                    # [B,3,ns,Np]
    nmask_t = jnp.pad(jnp.transpose(nmask, (0, 2, 1)),
                      ((0, 0), (0, 0), (0, pad)))                          # [B,ns,Np]
    qmask_t = jnp.pad(qmask[:, None, :], ((0, 0), (0, 0), (0, pad)))       # [B,1,Np]

    grid = (B, n_pad // tile_n)
    flops = 2 * B * C_out * C * n_pad + 2 * B * (C + 3) * ns * n_pad
    bytes_accessed = 4 * B * n_pad * (C * ns + 3 * ns + ns + 1 + C_out) + 2 * C_out * C

    out = pl.pallas_call(
        _pospool_kernel,
        out_shape=jax.ShapeDtypeStruct((B, C_out, n_pad), jnp.float32),
        grid_spec=pltpu.PrefetchScalarGridSpec(
            num_scalar_prefetch=0,
            grid=grid,
            in_specs=[
                pl.BlockSpec((1, C, ns, tile_n), lambda b, n: (b, 0, 0, n)),
                pl.BlockSpec((1, 3, ns, tile_n), lambda b, n: (b, 0, 0, n)),
                pl.BlockSpec((1, ns, tile_n), lambda b, n: (b, 0, n)),
                pl.BlockSpec((1, 1, tile_n), lambda b, n: (b, 0, n)),
                pl.BlockSpec((C_out, C), lambda b, n: (0, 0)),
                pl.BlockSpec((C_out, 1), lambda b, n: (0, 0)),
            ],
            out_specs=pl.BlockSpec((1, C_out, tile_n), lambda b, n: (b, 0, n)),
        ),
        compiler_params=pltpu.CompilerParams(
            dimension_semantics=("parallel", "parallel"),   # both axes shardable (v7x 2 TCs)
            vmem_limit_bytes=48 * 1024 * 1024),             # safe on v7x's 64 MiB physical VMEM
        cost_estimate=pl.CostEstimate(flops=flops,
                                      transcendentals=B * n_pad,
                                      bytes_accessed=bytes_accessed),
    )(feats_t, rel_t, nmask_t, qmask_t, w_scaled, bias)

    out = out[:, :, :N1]
    return out, (feats, rel, nmask, qmask, w_scaled, bias)


# ---------------------------------------------------------------------------
# Pure-JAX reference of the post-grouping math (independent layout) for checking.
# ---------------------------------------------------------------------------
def _pospool_reference(feats, rel, nmask, qmask, w_scaled, bias):
    B, C, N1, ns = feats.shape
    fm = nmask + (1.0 - qmask[:, :, None])                   # [B,N1,ns]
    rel_m = rel * fm[:, None]                                # [B,3,N1,ns]
    agg = feats.reshape(B, C // 3, 3, N1, ns) * rel_m[:, None]
    ssum = agg.reshape(B, C, N1, ns).sum(-1)                 # [B,C,N1]
    denom = jnp.maximum(fm.sum(-1), 1.0)                     # [B,N1]
    pooled = ssum / denom[:, None, :]
    # mirror the bf16 MXU inputs with f32 accumulation
    y = jnp.einsum('oc,bcn->bon',
                   w_scaled.astype(jnp.float32),
                   pooled.astype(jnp.bfloat16).astype(jnp.float32))
    y = y + bias.reshape(1, -1, 1)
    return jnp.maximum(y, 0.0)


if __name__ == "__main__":
    B, N1, N2 = 2, 16, 32
    C_in, C_out = 12, 16          # C_in must be divisible by 3 for 'xyz' embedding
    nsample = 8
    radius = 0.5

    key = jax.random.PRNGKey(0)
    k1, k2, k3, k4 = jax.random.split(key, 4)

    support_xyz = jax.random.uniform(k1, (B, N2, 3), dtype=jnp.float32)
    query_xyz = support_xyz[:, :N1, :]                     # queries subsampled from support
    support_mask = (jax.random.uniform(k2, (B, N2)) > 0.2).astype(jnp.float32)
    query_mask = support_mask[:, :N1]
    support_features = jax.random.normal(k3, (B, C_in, N2), dtype=jnp.float32)

    # Deterministic parameters (Conv1d weight squeezed from [C_out, C_in, 1]).
    w = (0.1 * jax.random.normal(k4, (C_out, C_in))).astype(jnp.float32)
    bn_gamma = 1.0 + 0.05 * jnp.arange(C_out, dtype=jnp.float32)
    bn_beta = 0.02 * jnp.arange(C_out, dtype=jnp.float32)
    bn_mean = jnp.zeros((C_out,), jnp.float32)
    bn_var = jnp.ones((C_out,), jnp.float32)

    out, (feats, rel, nmask, qmask, w_scaled, bias) = pospool_forward(
        query_xyz, support_xyz, query_mask, support_mask, support_features,
        radius=radius, nsample=nsample, w=w,
        bn_gamma=bn_gamma, bn_beta=bn_beta, bn_mean=bn_mean, bn_var=bn_var)
    out = jax.block_until_ready(out)

    ref = _pospool_reference(feats, rel, nmask, qmask, w_scaled, bias)
    assert out.shape == (B, C_out, N1)
    # tolerance covers the approximate EUP reciprocal + bf16 matmul rounding
    assert jnp.allclose(out, ref, atol=1e-2, rtol=1e-2), "mismatch vs reference"

    print("KERNEL_OK")
</pallas_src>

<mosaic_0001>
module attributes {stable_mosaic.version = 11 : i64} {
  func.func @_pospool_kernel(%arg0: i32, %arg1: i32, %arg2: memref<1x12x8x128xf32, #tpu.memory_space<vmem>>, %arg3: memref<1x3x8x128xf32, #tpu.memory_space<vmem>>, %arg4: memref<1x8x128xf32, #tpu.memory_space<vmem>>, %arg5: memref<1x1x128xf32, #tpu.memory_space<vmem>>, %arg6: memref<16x12xbf16, #tpu.memory_space<vmem>>, %arg7: memref<16x1xf32, #tpu.memory_space<vmem>>, %arg8: memref<1x16x128xf32, #tpu.memory_space<vmem>>) attributes {dimension_semantics = [#tpu.dimension_semantics<parallel>, #tpu.dimension_semantics<parallel>], iteration_bounds = array<i64: 2, 1>, scalar_prefetch = 0 : i64, scratch_operands = 0 : i64, tpu.core_type = #tpu.core_type<tc>, window_params = [{transform_indices = @transform_0, window_bounds = array<i64: 1, 12, 8, 128>}, {transform_indices = @transform_1, window_bounds = array<i64: 1, 3, 8, 128>}, {transform_indices = @transform_2, window_bounds = array<i64: 1, 8, 128>}, {transform_indices = @transform_3, window_bounds = array<i64: 1, 1, 128>}, {pipeline_mode = #tpu.pipeline_mode<synchronous>, transform_indices = @transform_4, window_bounds = array<i64: 16, 12>}, {pipeline_mode = #tpu.pipeline_mode<synchronous>, transform_indices = @transform_5, window_bounds = array<i64: 16, 1>}, {transform_indices = @transform_6, window_bounds = array<i64: 1, 16, 128>}]} {
    %c0 = arith.constant 0 : index
    %c0_0 = arith.constant 0 : index
    %c0_1 = arith.constant 0 : index
    %c0_2 = arith.constant 0 : index
    %0 = vector.load %arg2[%c0, %c0_0, %c0_1, %c0_2] : memref<1x12x8x128xf32, #tpu.memory_space<vmem>>, vector<1x12x8x128xf32>
    %1 = vector.shape_cast %0 : vector<1x12x8x128xf32> to vector<12x8x128xf32>
    %c0_3 = arith.constant 0 : index
    %c0_4 = arith.constant 0 : index
    %c0_5 = arith.constant 0 : index
    %c0_6 = arith.constant 0 : index
    %2 = vector.load %arg3[%c0_3, %c0_4, %c0_5, %c0_6] : memref<1x3x8x128xf32, #tpu.memory_space<vmem>>, vector<1x3x8x128xf32>
    %3 = vector.shape_cast %2 : vector<1x3x8x128xf32> to vector<3x8x128xf32>
    %c0_7 = arith.constant 0 : index
    %c0_8 = arith.constant 0 : index
    %c0_9 = arith.constant 0 : index
    %4 = vector.load %arg4[%c0_7, %c0_8, %c0_9] : memref<1x8x128xf32, #tpu.memory_space<vmem>>, vector<1x8x128xf32>
    %5 = vector.shape_cast %4 : vector<1x8x128xf32> to vector<8x128xf32>
    %c0_10 = arith.constant 0 : index
    %c0_11 = arith.constant 0 : index
    %c0_12 = arith.constant 0 : index
    %6 = vector.load %arg5[%c0_10, %c0_11, %c0_12] : memref<1x1x128xf32, #tpu.memory_space<vmem>>, vector<1x1x128xf32>
    %7 = vector.shape_cast %6 : vector<1x1x128xf32> to vector<1x128xf32>
    %cst = arith.constant 1.000000e+00 : f32
    %8 = vector.broadcast %cst : f32 to vector<1x128xf32>
    %9 = arith.subf %8, %7 : vector<1x128xf32>
    %10 = vector.broadcast %9 : vector<1x128xf32> to vector<8x128xf32>
    %11 = arith.addf %5, %10 : vector<8x128xf32>
    %12 = vector.shape_cast %11 : vector<8x128xf32> to vector<1x8x128xf32>
    %13 = vector.broadcast %12 : vector<1x8x128xf32> to vector<3x8x128xf32>
    %14 = arith.mulf %3, %13 : vector<3x8x128xf32>
    %15 = vector.shape_cast %1 : vector<12x8x128xf32> to vector<4x3x8x128xf32>
    %16 = vector.shape_cast %14 : vector<3x8x128xf32> to vector<1x3x8x128xf32>
    %17 = vector.broadcast %16 : vector<1x3x8x128xf32> to vector<4x3x8x128xf32>
    %18 = arith.mulf %15, %17 : vector<4x3x8x128xf32>
    %19 = vector.shape_cast %18 : vector<4x3x8x128xf32> to vector<12x8x128xf32>
    %cst_13 = arith.constant dense<0.000000e+00> : vector<12x128xf32>
    %20 = vector.multi_reduction <add>, %19, %cst_13 [1] : vector<12x8x128xf32> to vector<12x128xf32>
    %cst_14 = arith.constant dense<0.000000e+00> : vector<128xf32>
    %21 = vector.multi_reduction <add>, %11, %cst_14 [0] : vector<8x128xf32> to vector<128xf32>
    %22 = vector.shape_cast %21 : vector<128xf32> to vector<1x128xf32>
    %cst_15 = arith.constant 1.000000e+00 : f32
    %23 = vector.broadcast %cst_15 : f32 to vector<1x128xf32>
    %24 = arith.maximumf %22, %23 : vector<1x128xf32>
    %25 = tpu.reciprocal %24 {approx = true} : vector<1x128xf32> -> vector<1x128xf32>
    %26 = vector.broadcast %25 : vector<1x128xf32> to vector<12x128xf32>
    %27 = arith.mulf %20, %26 : vector<12x128xf32>
    %c0_16 = arith.constant 0 : index
    %c0_17 = arith.constant 0 : index
    %28 = vector.load %arg6[%c0_16, %c0_17] : memref<16x12xbf16, #tpu.memory_space<vmem>>, vector<16x12xbf16>
    %29 = arith.truncf %27 : vector<12x128xf32> to vector<12x128xbf16>
    %cst_18 = arith.constant dense<0.000000e+00> : vector<16x128xf32>
    %30 = tpu.matmul %28, %29, %cst_18 {dimension_numbers = #tpu.dot_dimension_numbers<[1], [0], [0], [1], [0, 0, 1, 1], [], []>} : vector<16x12xbf16>, vector<12x128xbf16>, vector<16x128xf32> -> vector<16x128xf32>
    %c0_19 = arith.constant 0 : index
    %c0_20 = arith.constant 0 : index
    %31 = vector.load %arg7[%c0_19, %c0_20] : memref<16x1xf32, #tpu.memory_space<vmem>>, vector<16x1xf32>
    %32 = vector.broadcast %31 : vector<16x1xf32> to vector<16x128xf32>
    %33 = arith.addf %30, %32 : vector<16x128xf32>
    %cst_21 = arith.constant 0.000000e+00 : f32
    %34 = vector.broadcast %cst_21 : f32 to vector<16x128xf32>
    %35 = arith.maximumf %33, %34 : vector<16x128xf32>
    %c0_22 = arith.constant 0 : index
    %c0_23 = arith.constant 0 : index
    %c0_24 = arith.constant 0 : index
    %36 = vector.load %arg8[%c0_22, %c0_23, %c0_24] : memref<1x16x128xf32, #tpu.memory_space<vmem>>, vector<1x16x128xf32>
    %37 = vector.shape_cast %36 : vector<1x16x128xf32> to vector<16x128xf32>
    %38 = vector.shape_cast %35 : vector<16x128xf32> to vector<1x16x128xf32>
    tpu.vector_store %arg8[%c0_22, %c0_23, %c0_24], %38 {strides = array<i32>} : memref<1x16x128xf32, #tpu.memory_space<vmem>>, vector<1x16x128xf32>,
    return
  }
  func.func @transform_0(%arg0: i32, %arg1: i32) -> (i32, i32, i32, i32) {
    %c0_i32 = arith.constant 0 : i32
    %c0_i32_0 = arith.constant 0 : i32
    %c0_i32_1 = arith.constant 0 : i32
    return %arg0, %c0_i32, %c0_i32_0, %arg1 : i32, i32, i32, i32
  }
  func.func @transform_1(%arg0: i32, %arg1: i32) -> (i32, i32, i32, i32) {
    %c0_i32 = arith.constant 0 : i32
    %c0_i32_0 = arith.constant 0 : i32
    %c0_i32_1 = arith.constant 0 : i32
    return %arg0, %c0_i32, %c0_i32_0, %arg1 : i32, i32, i32, i32
  }
  func.func @transform_2(%arg0: i32, %arg1: i32) -> (i32, i32, i32) {
    %c0_i32 = arith.constant 0 : i32
    %c0_i32_0 = arith.constant 0 : i32
    return %arg0, %c0_i32, %arg1 : i32, i32, i32
  }
  func.func @transform_3(%arg0: i32, %arg1: i32) -> (i32, i32, i32) {
    %c0_i32 = arith.constant 0 : i32
    %c0_i32_0 = arith.constant 0 : i32
    return %arg0, %c0_i32, %arg1 : i32, i32, i32
  }
  func.func @transform_4(%arg0: i32, %arg1: i32) -> (i32, i32) {
    %c0_i32 = arith.constant 0 : i32
    %c0_i32_0 = arith.constant 0 : i32
    %c0_i32_1 = arith.constant 0 : i32
    return %c0_i32, %c0_i32_0 : i32, i32
  }
  func.func @transform_5(%arg0: i32, %arg1: i32) -> (i32, i32) {
    %c0_i32 = arith.constant 0 : i32
    %c0_i32_0 = arith.constant 0 : i32
    %c0_i32_1 = arith.constant 0 : i32
    return %c0_i32, %c0_i32_0 : i32, i32
  }
  func.func @transform_6(%arg0: i32, %arg1: i32) -> (i32, i32, i32) {
    %c0_i32 = arith.constant 0 : i32
    %c0_i32_0 = arith.constant 0 : i32
    return %arg0, %c0_i32, %arg1 : i32, i32, i32
  }
}

</mosaic_0001>

<llo_original>
// kernel: tpu_custom_call.1
$region0: #{tpu_custom_call.1}
  #allocation0 [shape = 'u32[]', space=smem, size = 0x4, offset = 0x4, fixed_abs, tag = 'smem constant byte address 0x4 - core index']
  #allocation1 [shape = 'u32[144,128]{1,0:T(1,128)}', space=vmem, size = 0x12000, scoped, tag = 'internal scratch']
  %s0 = inlined_call_operand.hbm [shape: f32[2,12,8,128], index: 0, kind: input, shape index: {}]
  %s1 = inlined_call_operand.hbm [shape: f32[2,3,8,128], index: 1, kind: input, shape index: {}]
  %s2 = inlined_call_operand.vmem [shape: f32[2,8,128], index: 2, kind: input, shape index: {}]
  %s3 = inlined_call_operand.hbm [shape: f32[2,1,128], index: 3, kind: input, shape index: {}]
  %s4 = inlined_call_operand.vmem [shape: bf16[16,12], index: 4, kind: input, shape index: {}]
  %s5 = inlined_call_operand.vmem [shape: f32[16,1], index: 5, kind: input, shape index: {}]
  %s6 = inlined_call_operand.hbm [shape: f32[2,16,128], index: 6, kind: output, shape index: {}]
  %s7 = sld [smem:[#allocation0]]
  $region69: #{tpu_custom_call.1} parent=0
    _
  %s9 = ssub.s32 1, %s7
  %s10 = scalar_select 0, %s9, %s7
  $region1: #{tpu_custom_call.1} parent=0
    #allocation2 [shape = 'u8[98304]{0}', space=vmem, size = 0x18000, scoped, tag = 'input window, operand 0']
    #allocation3 [shape = 's32[2]{0}', space=sflag, size = 0x8, scoped, tag = 'scoped memory for tpu_custom_call.1']
    #allocation4 [shape = 's32[2]{0}', space=sflag, size = 0x8, scoped, tag = 'scoped memory for tpu_custom_call.1']
    #allocation5 [shape = 'u8[24576]{0}', space=vmem, size = 0x6000, scoped, tag = 'input window, operand 1']
    #allocation6 [shape = 's32[2]{0}', space=sflag, size = 0x8, scoped, tag = 'scoped memory for tpu_custom_call.1']
    #allocation7 [shape = 'u8[1024]{0}', space=vmem, size = 0x400, scoped, tag = 'input window, operand 3']
    #allocation8 [shape = 'u8[16384]{0}', space=vmem, size = 0x4000, scoped, tag = 'output window, operand 0']
    %11 = vsyncpa [#allocation3], 0
    %s12 = scalar_lea.sflag [#allocation3], 1
    %13 = vsyncpa %s12, 0
    %14 = vsyncpa [#allocation6], 0
    %s15 = scalar_lea.sflag [#allocation6], 1
    %16 = vsyncpa %s15, 0
    %17 = vsyncpa [#allocation4], 0
    %s18 = scalar_lea.sflag [#allocation4], 1
    %19 = vsyncpa %s18, 0
    loop: start=0, step=1, limit=4
    $region2: #{tpu_custom_call.1} parent=1 // loop_pre_header
      _
    $region3: #{tpu_custom_call.1} parent=1 // loop_header
      %s21 = sphi 0, %s25
      %p22 = scmp.ge.s32.totalorder %s21, 4
      %s28 = sphi 0, %s40
      %s29 = sphi 0, %s36
      %s30 = sphi 0, %s28
      %s31 = sphi 0, %s29
      %s32 = sphi 0, %s30
      %s33 = sphi 0, %s31
      %s45 = sphi 0, %s47
      %s48 = sphi 0, %s45
      %s49 = sphi 0, %s48
      %s65 = sphi 0, %s49
      %s73 = sphi 0, %s75
      %s76 = sphi 0, %s73
      %s77 = sphi 0, %s76
      %s93 = sphi 0, %s77
      %s101 = sphi 0, %s103
      %s104 = sphi 0, %s101
      %s105 = sphi 0, %s104
      %s121 = sphi 0, %s105
      %s129 = sphi 0, %s131
      %s132 = sphi 0, %s129
      %s133 = sphi 0, %s132
      %s149 = sphi 0, %s133
      %s153 = sphi 0, %s153
      %s155 = sphi 0, %s153
      %s156 = sphi 0, %s155
      %s170 = sphi 0, %s156
      %s174 = sphi 0, %s174
      %s176 = sphi 0, %s174
      %s177 = sphi 0, %s176
      %s191 = sphi 0, %s177
      %s199 = sphi 0, %s201
      %s202 = sphi 0, %s199
      %s203 = sphi 0, %s202
      %s219 = sphi 0, %s203
    $region4: #{tpu_custom_call.1} parent=1 // loop_header_branch
      %24 = sbr.rel (%p22) target = $region8
    $region5: #{tpu_custom_call.1} parent=1 // loop_body
      %s26 = ssub.s32 %s21, 1
      %s27 = ssub.s32 %s21, 2
      %s34 = sadd.s32 1, %s29
      %p35 = scmp.ge.s32.totalorder %s34, 1
      %s36 = scalar_select %p35, 0, %s34
      %s37 = sadd.s32 1, %s28
      %s38 = scalar_select %p35, %s37, %s28
      %p39 = scmp.ge.s32.totalorder %s38, 2
      %s40 = scalar_select %p39, 0, %s38
      %s41 = ssub.s32 %s28, %s40
      %s42 = ssub.s32 %s29, %s36
      %s43 = sor.u32 %s41, %s42
      %p44 = scmp.eq.s32.totalorder %s43, 0
      %s46 = sadd.s32 %s45, 1
      %s47 = scalar_select %p44, %s45, %s46
      %p50 = pneg %p44
      %p51 = scmp.eq.s32.totalorder %s21, 1
      %p52 = por %p50, %p51
      %p53 = scmp.ne.s32.totalorder %s45, %s48
      %p54 = scmp.eq.s32.totalorder %s21, 0
      %p55 = por %p53, %p54
      %p56 = scmp.ne.s32.totalorder %s45, %s48
      %p57 = scmp.eq.s32.totalorder %s26, 1
      %p58 = por %p56, %p57
      %p59 = scmp.ne.s32.totalorder %s48, %s49
      %p60 = scmp.eq.s32.totalorder %s26, 0
      %p61 = por %p59, %p60
      %p62 = scmp.ne.s32.totalorder %s48, %s49
      %p63 = scmp.eq.s32.totalorder %s27, 1
      %p64 = por %p62, %p63
      %p66 = scmp.ne.s32.totalorder %s49, %s65
      %p67 = scmp.eq.s32.totalorder %s27, 0
      %p68 = por %p66, %p67
      %s69 = ssub.s32 %s28, %s40
      %s70 = ssub.s32 %s29, %s36
      %s71 = sor.u32 %s69, %s70
      %p72 = scmp.eq.s32.totalorder %s71, 0
      %s74 = sadd.s32 %s73, 1
      %s75 = scalar_select %p72, %s73, %s74
      %p78 = pneg %p72
      %p79 = scmp.eq.s32.totalorder %s21, 1
      %p80 = por %p78, %p79
      %p81 = scmp.ne.s32.totalorder %s73, %s76
      %p82 = scmp.eq.s32.totalorder %s21, 0
      %p83 = por %p81, %p82
      %p84 = scmp.ne.s32.totalorder %s73, %s76
      %p85 = scmp.eq.s32.totalorder %s26, 1
      %p86 = por %p84, %p85
      %p87 = scmp.ne.s32.totalorder %s76, %s77
      %p88 = scmp.eq.s32.totalorder %s26, 0
      %p89 = por %p87, %p88
      %p90 = scmp.ne.s32.totalorder %s76, %s77
      %p91 = scmp.eq.s32.totalorder %s27, 1
      %p92 = por %p90, %p91
      %p94 = scmp.ne.s32.totalorder %s77, %s93
      %p95 = scmp.eq.s32.totalorder %s27, 0
      %p96 = por %p94, %p95
      %s97 = ssub.s32 %s28, %s40
      %s98 = ssub.s32 %s29, %s36
      %s99 = sor.u32 %s97, %s98
      %p100 = scmp.eq.s32.totalorder %s99, 0
      %s102 = sadd.s32 %s101, 1
      %s103 = scalar_select %p100, %s101, %s102
      %p106 = pneg %p100
      %p107 = scmp.eq.s32.totalorder %s21, 1
      %p108 = por %p106, %p107
      %p109 = scmp.ne.s32.totalorder %s101, %s104
      %p110 = scmp.eq.s32.totalorder %s21, 0
      %p111 = por %p109, %p110
      %p112 = scmp.ne.s32.totalorder %s101, %s104
      %p113 = scmp.eq.s32.totalorder %s26, 1
      %p114 = por %p112, %p113
      %p115 = scmp.ne.s32.totalorder %s104, %s105
      %p116 = scmp.eq.s32.totalorder %s26, 0
      %p117 = por %p115, %p116
      %p118 = scmp.ne.s32.totalorder %s104, %s105
      %p119 = scmp.eq.s32.totalorder %s27, 1
      %p120 = por %p118, %p119
      %p122 = scmp.ne.s32.totalorder %s105, %s121
      %p123 = scmp.eq.s32.totalorder %s27, 0
      %p124 = por %p122, %p123
      %s125 = ssub.s32 %s28, %s40
      %s126 = ssub.s32 %s29, %s36
      %s127 = sor.u32 %s125, %s126
      %p128 = scmp.eq.s32.totalorder %s127, 0
      %s130 = sadd.s32 %s129, 1
      %s131 = scalar_select %p128, %s129, %s130
      %p134 = pneg %p128
      %p135 = scmp.eq.s32.totalorder %s21, 1
      %p136 = por %p134, %p135
      %p137 = scmp.ne.s32.totalorder %s129, %s132
      %p138 = scmp.eq.s32.totalorder %s21, 0
      %p139 = por %p137, %p138
      %p140 = scmp.ne.s32.totalorder %s129, %s132
      %p141 = scmp.eq.s32.totalorder %s26, 1
      %p142 = por %p140, %p141
      %p143 = scmp.ne.s32.totalorder %s132, %s133
      %p144 = scmp.eq.s32.totalorder %s26, 0
      %p145 = por %p143, %p144
      %p146 = scmp.ne.s32.totalorder %s132, %s133
      %p147 = scmp.eq.s32.totalorder %s27, 1
      %p148 = por %p146, %p147
      %p150 = scmp.ne.s32.totalorder %s133, %s149
      %p151 = scmp.eq.s32.totalorder %s27, 0
      %p152 = por %p150, %p151
      %s154 = sadd.s32 %s153, 1
      %p157 = scmp.eq.s32.totalorder %s21, 1
      %p158 = scmp.ne.s32.totalorder %s153, %s155
      %p159 = scmp.eq.s32.totalorder %s21, 0
      %p160 = por %p158, %p159
      %p161 = scmp.ne.s32.totalorder %s153, %s155
      %p162 = scmp.eq.s32.totalorder %s26, 1
      %p163 = por %p161, %p162
      %p164 = scmp.ne.s32.totalorder %s155, %s156
      %p165 = scmp.eq.s32.totalorder %s26, 0
      %p166 = por %p164, %p165
      %p167 = scmp.ne.s32.totalorder %s155, %s156
      %p168 = scmp.eq.s32.totalorder %s27, 1
      %p169 = por %p167, %p168
      %p171 = scmp.ne.s32.totalorder %s156, %s170
      %p172 = scmp.eq.s32.totalorder %s27, 0
      %p173 = por %p171, %p172
      %s175 = sadd.s32 %s174, 1
      %p178 = scmp.eq.s32.totalorder %s21, 1
      %p179 = scmp.ne.s32.totalorder %s174, %s176
      %p180 = scmp.eq.s32.totalorder %s21, 0
      %p181 = por %p179, %p180
      %p182 = scmp.ne.s32.totalorder %s174, %s176
      %p183 = scmp.eq.s32.totalorder %s26, 1
      %p184 = por %p182, %p183
      %p185 = scmp.ne.s32.totalorder %s176, %s177
      %p186 = scmp.eq.s32.totalorder %s26, 0
      %p187 = por %p185, %p186
      %p188 = scmp.ne.s32.totalorder %s176, %s177
      %p189 = scmp.eq.s32.totalorder %s27, 1
      %p190 = por %p188, %p189
      %p192 = scmp.ne.s32.totalorder %s177, %s191
      %p193 = scmp.eq.s32.totalorder %s27, 0
      %p194 = por %p192, %p193
      %s195 = ssub.s32 %s28, %s40
      %s196 = ssub.s32 %s29, %s36
      %s197 = sor.u32 %s195, %s196
      %p198 = scmp.eq.s32.totalorder %s197, 0
      %s200 = sadd.s32 %s199, 1
      %s201 = scalar_select %p198, %s199, %s200
      %p204 = pneg %p198
      %p205 = scmp.eq.s32.totalorder %s21, 1
      %p206 = por %p204, %p205
      %p207 = scmp.ne.s32.totalorder %s199, %s202
      %p208 = scmp.eq.s32.totalorder %s21, 0
      %p209 = por %p207, %p208
      %p210 = scmp.ne.s32.totalorder %s199, %s202
      %p211 = scmp.eq.s32.totalorder %s26, 1
      %p212 = por %p210, %p211
      %p213 = scmp.ne.s32.totalorder %s202, %s203
      %p214 = scmp.eq.s32.totalorder %s26, 0
      %p215 = por %p213, %p214
      %p216 = scmp.ne.s32.totalorder %s202, %s203
      %p217 = scmp.eq.s32.totalorder %s27, 1
      %p218 = por %p216, %p217
      %p220 = scmp.ne.s32.totalorder %s203, %s219
      %p221 = scmp.eq.s32.totalorder %s27, 0
      %p222 = por %p220, %p221
      %p223 = scmp.le.s32.totalorder 1, %s21
      %p224 = scmp.lt.s32.totalorder %s21, 3
      %p225 = pnand %p223, %p224
      %p226 = pneg %p225
      // Predicated region
      $region9: #{tpu_custom_call.1} parent=5 // pred_check
        _
      $region10: #{tpu_custom_call.1} parent=5 // pred_check_branch
        %228 = sbr.rel (%p225) target = $region12
      $region11: #{tpu_custom_call.1} parent=5 // pred_region
        %s229 = ssub.s32 %s21, 1
        // Predicated region
        $region13: #{tpu_custom_call.1} parent=11 // pred_check
          %p230 = pneg %p166
        $region14: #{tpu_custom_call.1} parent=11 // pred_check_branch
          %232 = sbr.rel (%p230) target = $region16
        $region15: #{tpu_custom_call.1} parent=11 // pred_region
          _
        $region16: #{tpu_custom_call.1} parent=11 // pred_fallthru
          _
        // Predicated region
        $region17: #{tpu_custom_call.1} parent=11 // pred_check
          %p233 = pneg %p187
        $region18: #{tpu_custom_call.1} parent=11 // pred_check_branch
          %235 = sbr.rel (%p233) target = $region20
        $region19: #{tpu_custom_call.1} parent=11 // pred_region
          _
        $region20: #{tpu_custom_call.1} parent=11 // pred_fallthru
          _
      $region12: #{tpu_custom_call.1} parent=5 // pred_fallthru
        _
      %p236 = scmp.lt.s32.totalorder %s21, 2
      // Predicated region
      $region21: #{tpu_custom_call.1} parent=5 // pred_check
        %p237 = pneg %p236
      $region22: #{tpu_custom_call.1} parent=5 // pred_check_branch
        %239 = sbr.rel (%p237) target = $region24
      $region23: #{tpu_custom_call.1} parent=5 // pred_region
        // Predicated region
        $region25: #{tpu_custom_call.1} parent=23 // pred_check
          %p240 = pneg %p55
        $region26: #{tpu_custom_call.1} parent=23 // pred_check_branch
          %242 = sbr.rel (%p240) target = $region28
        $region27: #{tpu_custom_call.1} parent=23 // pred_region
          %s243 = sand.u32 %s45, 1
          %s244 = scalar_lea.sflag [#allocation3], %s243
          %s245 = sand.u32 %s45, 1
          %s246 = smul.addr %s245, 96
          %s247 = scalar_lea.vmem [#allocation2], %s246
          %s249 = ssub.s32 1536, 1536
          %250 = vsyncadd %s244, %s249
          %s251 = smul.addr %s28, 12
          %s252 = sadd.s32 %s29, %s251
          %s253 = smul.addr %s252, 128
          %s254 = scalar_lea.hbm %s0, %s253
          %s255 = sshll.u32 %s247, 4
          %s256 = int_to_ptr.vmem [resolvable:$true] %s255
          %261 = dma.hbm_to_vmem [thread:$0]  %s254, 1536, %s256, %s244, 128, 128, 8
        $region28: #{tpu_custom_call.1} parent=23 // pred_fallthru
          _
        // Predicated region
        $region29: #{tpu_custom_call.1} parent=23 // pred_check
          %p262 = pneg %p83
        $region30: #{tpu_custom_call.1} parent=23 // pred_check_branch
          %264 = sbr.rel (%p262) target = $region32
        $region31: #{tpu_custom_call.1} parent=23 // pred_region
          %s265 = sand.u32 %s21, 1
          %s266 = scalar_lea.sflag [#allocation6], %s265
          %s267 = sand.u32 %s73, 1
          %s268 = smul.addr %s267, 24
          %s269 = scalar_lea.vmem [#allocation5], %s268
          %s271 = ssub.s32 384, 384
          %272 = vsyncadd %s266, %s271
          %s273 = smul.addr %s28, 3
          %s274 = sadd.s32 %s29, %s273
          %s275 = smul.addr %s274, 128
          %s276 = scalar_lea.hbm %s1, %s275
          %s277 = sshll.u32 %s269, 4
          %s278 = int_to_ptr.vmem [resolvable:$true] %s277
          %283 = dma.hbm_to_vmem [thread:$0]  %s276, 384, %s278, %s266, 128, 128, 8
        $region32: #{tpu_custom_call.1} parent=23 // pred_fallthru
          _
        // Predicated region
        $region33: #{tpu_custom_call.1} parent=23 // pred_check
          %p284 = pneg %p111
        $region34: #{tpu_custom_call.1} parent=23 // pred_check_branch
          %286 = sbr.rel (%p284) target = $region36
        $region35: #{tpu_custom_call.1} parent=23 // pred_region
          %p287 = scmp.lt.s32.totalorder %s28, 1
          %s288 = scalar_select %p287, %s28, 1
          %p289 = scmp.lt.s32.totalorder %s29, 0
          %s290 = scalar_select %p289, %s29, 0
          %s291 = sadd.s32 %s290, %s288
          %s292 = smul.addr %s291, 8
          %s293 = scalar_lea.vmem %s2, %s292
        $region36: #{tpu_custom_call.1} parent=23 // pred_fallthru
          _
        // Predicated region
        $region37: #{tpu_custom_call.1} parent=23 // pred_check
          %p294 = pneg %p139
        $region38: #{tpu_custom_call.1} parent=23 // pred_check_branch
          %296 = sbr.rel (%p294) target = $region40
        $region39: #{tpu_custom_call.1} parent=23 // pred_region
          %s297 = sand.u32 %s21, 1
          %s298 = scalar_lea.sflag [#allocation6], %s297
          %s299 = sand.u32 %s129, 1
          %s300 = scalar_lea.vmem [#allocation7], %s299
          %s302 = ssub.s32 16, 16
          %303 = vsyncadd %s298, %s302
          %s304 = sadd.s32 %s29, %s28
          %s305 = smul.addr %s304, 16
          %s306 = scalar_lea.hbm %s3, %s305
          %s308 = sshll.u32 %s300, 4
          %s309 = int_to_ptr.vmem [resolvable:$true] %s308
          %311 = dma.hbm_to_vmem [thread:$0]  %s306, 16, %s309, %s298
        $region40: #{tpu_custom_call.1} parent=23 // pred_fallthru
          _
      $region24: #{tpu_custom_call.1} parent=5 // pred_fallthru
        _
      %p312 = scmp.le.s32.totalorder 1, %s21
      %p313 = scmp.lt.s32.totalorder %s21, 3
      %p314 = pnand %p312, %p313
      %p315 = pneg %p314
      // Predicated region
      $region41: #{tpu_custom_call.1} parent=5 // pred_check
        _
      $region42: #{tpu_custom_call.1} parent=5 // pred_check_branch
        %317 = sbr.rel (%p314) target = $region44
      $region43: #{tpu_custom_call.1} parent=5 // pred_region
        %s318 = ssub.s32 %s21, 1
        %s319 = sand.u32 %s48, 1
        %s320 = scalar_lea.sflag [#allocation3], %s319
        %s321 = sand.u32 %s48, 1
        %s322 = smul.addr %s321, 96
        %s323 = scalar_lea.vmem [#allocation2], %s322
        // Predicated region
        $region45: #{tpu_custom_call.1} parent=43 // pred_check
          %p324 = pneg %p61
        $region46: #{tpu_custom_call.1} parent=43 // pred_check_branch
          %326 = sbr.rel (%p324) target = $region48
        $region47: #{tpu_custom_call.1} parent=43 // pred_region
          %327 = dma.done %s320, 1536
        $region48: #{tpu_custom_call.1} parent=43 // pred_fallthru
          _
        %s328 = sand.u32 %s26, 1
        %s329 = scalar_lea.sflag [#allocation6], %s328
        %s330 = sand.u32 %s76, 1
        %s331 = smul.addr %s330, 24
        %s332 = scalar_lea.vmem [#allocation5], %s331
        // Predicated region
        $region49: #{tpu_custom_call.1} parent=43 // pred_check
          %p333 = pneg %p89
        $region50: #{tpu_custom_call.1} parent=43 // pred_check_branch
          %335 = sbr.rel (%p333) target = $region52
        $region51: #{tpu_custom_call.1} parent=43 // pred_region
          %336 = dma.done %s329, 384
        $region52: #{tpu_custom_call.1} parent=43 // pred_fallthru
          _
        %s337 = sand.u32 %s26, 1
        %s338 = scalar_lea.sflag [#allocation6], %s337
        %s339 = sand.u32 %s132, 1
        %s340 = scalar_lea.vmem [#allocation7], %s339
        // Predicated region
        $region53: #{tpu_custom_call.1} parent=43 // pred_check
          %p341 = pneg %p145
        $region54: #{tpu_custom_call.1} parent=43 // pred_check_branch
          %343 = sbr.rel (%p341) target = $region56
        $region55: #{tpu_custom_call.1} parent=43 // pred_region
          %344 = dma.done %s338, 16
        $region56: #{tpu_custom_call.1} parent=43 // pred_fallthru
          _
        %s345 = sand.u32 %s48, 1
        %s346 = scalar_lea.sflag [#allocation3], %s345
        %s347 = sand.u32 %s48, 1
        %s348 = smul.addr %s347, 96
        %s349 = scalar_lea.vmem [#allocation2], %s348
        %p350 = pneg %p61
        %p351 = pneg %p58
        %s352 = sand.u32 %s26, 1
        %s353 = scalar_lea.sflag [#allocation6], %s352
        %s354 = sand.u32 %s76, 1
        %s355 = smul.addr %s354, 24
        %s356 = scalar_lea.vmem [#allocation5], %s355
        %p357 = pneg %p89
        %p358 = pneg %p86
        %p359 = scmp.lt.s32.totalorder %s30, 1
        %s360 = scalar_select %p359, %s30, 1
        %p361 = scmp.lt.s32.totalorder %s31, 0
        %s362 = scalar_select %p361, %s31, 0
        %s363 = sadd.s32 %s362, %s360
        %s364 = smul.addr %s363, 8
        %s365 = scalar_lea.vmem %s2, %s364
        %p366 = pneg %p117
        %p367 = pneg %p114
        %s368 = sand.u32 %s26, 1
        %s369 = scalar_lea.sflag [#allocation6], %s368
        %s370 = sand.u32 %s132, 1
        %s371 = scalar_lea.vmem [#allocation7], %s370
        %p372 = pneg %p145
        %p373 = pneg %p142
        %p374 = pneg %p166
        %p375 = pneg %p163
        %p376 = pneg %p187
        %p377 = pneg %p184
        %p378 = pneg %p215
        %p379 = pneg %p212
        %s380 = sand.u32 %s202, 1
        %s381 = scalar_lea.sflag [#allocation4], %s380
        %s382 = sand.u32 %s202, 1
        %s383 = smul.addr %s382, 16
        %s384 = scalar_lea.vmem [#allocation8], %s383
        %p385 = scmp.lt.s32.totalorder %s30, 1
        %s386 = scalar_select %p385, %s30, 1
        %p387 = scmp.lt.s32.totalorder %s31, 0
        %s388 = scalar_select %p387, %s31, 0
        %s389 = sadd.s32 %s388, %s386
        %s390 = smul.addr %s389, 8
        %s391 = scalar_lea.vmem %s2, %s390
        %v393 = vld [vmem:[%s323] sm:$0xff]
        %v394 = vld [vmem:[%s323 + $0x8] sm:$0xff]
        %v395 = vld [vmem:[%s323 + $0x10] sm:$0xff]
        %v396 = vld [vmem:[%s323 + $0x18] sm:$0xff]
        %v397 = vld [vmem:[%s323 + $0x20] sm:$0xff]
        %v398 = vld [vmem:[%s323 + $0x28] sm:$0xff]
        %v399 = vld [vmem:[%s323 + $0x30] sm:$0xff]
        %v400 = vld [vmem:[%s323 + $0x38] sm:$0xff]
        %v401 = vld [vmem:[%s323 + $0x40] sm:$0xff]
        %v402 = vld [vmem:[%s323 + $0x48] sm:$0xff]
        %v403 = vld [vmem:[%s323 + $0x50] sm:$0xff]
        %v404 = vld [vmem:[%s323 + $0x58] sm:$0xff]
        %v405 = vld [vmem:[%s332] sm:$0xff]
        %v406 = vld [vmem:[%s332 + $0x8] sm:$0xff]
        %v407 = vld [vmem:[%s332 + $0x10] sm:$0xff]
        %v408 = vld [vmem:[%s391] sm:$0xff]
        %v409 = vld [vmem:[%s340] sm:$0x1]
        %v410 = vsub.f32 1.0, %v409
        %v412 = vlaneseq
        %v413 = vshrl.u32 %v412, 7
        %v414 = vsub.s32 0, %v413
        %v415 = vrot.slane %v410, %v414
        %v417 = vadd.f32 %v408, %v415
        %v418 = vmul.f32 %v405, %v417
        %v419 = vmul.f32 %v406, %v417
        %v420 = vmul.f32 %v407, %v417
        %v421 = vmul.f32 %v393, %v418
        %v422 = vmul.f32 %v394, %v419
        %v423 = vmul.f32 %v395, %v420
        %v424 = vmul.f32 %v396, %v418
        %v425 = vmul.f32 %v397, %v419
        %v426 = vmul.f32 %v398, %v420
        %v427 = vmul.f32 %v399, %v418
        %v428 = vmul.f32 %v400, %v419
        %v429 = vmul.f32 %v401, %v420
        %v430 = vmul.f32 %v402, %v418
        %v431 = vmul.f32 %v403, %v419
        %v432 = vmul.f32 %v404, %v420
        %v433 = vrot.slane %v421, 4
        %v434 = vadd.f32 %v421, %v433
        %v435 = vrot.slane %v434, 2
        %v436 = vadd.f32 %v434, %v435
        %v437 = vrot.slane %v436, 1
        %v438 = vadd.f32 %v436, %v437
        %v439 = vrot.slane %v422, 4
        %v440 = vadd.f32 %v422, %v439
        %v441 = vrot.slane %v440, 2
        %v442 = vadd.f32 %v440, %v441
        %v443 = vrot.slane %v442, 1
        %v444 = vadd.f32 %v442, %v443
        %v445 = vrot.slane %v423, 4
        %v446 = vadd.f32 %v423, %v445
        %v447 = vrot.slane %v446, 2
        %v448 = vadd.f32 %v446, %v447
        %v449 = vrot.slane %v448, 1
        %v450 = vadd.f32 %v448, %v449
        %v451 = vrot.slane %v424, 4
        %v452 = vadd.f32 %v424, %v451
        %v453 = vrot.slane %v452, 2
        %v454 = vadd.f32 %v452, %v453
        %v455 = vrot.slane %v454, 1
        %v456 = vadd.f32 %v454, %v455
        %v457 = vrot.slane %v425, 4
        %v458 = vadd.f32 %v425, %v457
        %v459 = vrot.slane %v458, 2
        %v460 = vadd.f32 %v458, %v459
        %v461 = vrot.slane %v460, 1
        %v462 = vadd.f32 %v460, %v461
        %v463 = vrot.slane %v426, 4
        %v464 = vadd.f32 %v426, %v463
        %v465 = vrot.slane %v464, 2
        %v466 = vadd.f32 %v464, %v465
        %v467 = vrot.slane %v466, 1
        %v468 = vadd.f32 %v466, %v467
        %v469 = vrot.slane %v427, 4
        %v470 = vadd.f32 %v427, %v469
        %v471 = vrot.slane %v470, 2
        %v472 = vadd.f32 %v470, %v471
        %v473 = vrot.slane %v472, 1
        %v474 = vadd.f32 %v472, %v473
        %v475 = vrot.slane %v428, 4
        %v476 = vadd.f32 %v428, %v475
        %v477 = vrot.slane %v476, 2
        %v478 = vadd.f32 %v476, %v477
        %v479 = vrot.slane %v478, 1
        %v480 = vadd.f32 %v478, %v479
        %v481 = vrot.slane %v429, 4
        %v482 = vadd.f32 %v429, %v481
        %v483 = vrot.slane %v482, 2
        %v484 = vadd.f32 %v482, %v483
        %v485 = vrot.slane %v484, 1
        %v486 = vadd.f32 %v484, %v485
        %v487 = vrot.slane %v430, 4
        %v488 = vadd.f32 %v430, %v487
        %v489 = vrot.slane %v488, 2
        %v490 = vadd.f32 %v488, %v489
        %v491 = vrot.slane %v490, 1
        %v492 = vadd.f32 %v490, %v491
        %v493 = vrot.slane %v431, 4
        %v494 = vadd.f32 %v431, %v493
        %v495 = vrot.slane %v494, 2
        %v496 = vadd.f32 %v494, %v495
        %v497 = vrot.slane %v496, 1
        %v498 = vadd.f32 %v496, %v497
        %v499 = vrot.slane %v432, 4
        %v500 = vadd.f32 %v432, %v499
        %v501 = vrot.slane %v500, 2
        %v502 = vadd.f32 %v500, %v501
        %v503 = vrot.slane %v502, 1
        %v504 = vadd.f32 %v502, %v503
        %v505 = vrot.slane %v417, 4
        %v506 = vadd.f32 %v417, %v505
        %v507 = vrot.slane %v506, 2
        %v508 = vadd.f32 %v506, %v507
        %v509 = vrot.slane %v508, 1
        %v510 = vadd.f32 %v508, %v509
        %v511 = vmax.f32 %v510, 1.0
        %v512 = vrcp.pop %v511
        %v513 = vmul.f32 %v438, %v512
        %v514 = vmul.f32 %v444, %v512
        %v515 = vmul.f32 %v450, %v512
        %v516 = vmul.f32 %v456, %v512
        %v517 = vmul.f32 %v462, %v512
        %v518 = vmul.f32 %v468, %v512
        %v519 = vmul.f32 %v474, %v512
        %v520 = vmul.f32 %v480, %v512
        %v521 = vmul.f32 %v486, %v512
        %v522 = vmul.f32 %v492, %v512
        %v523 = vmul.f32 %v498, %v512
        %v524 = vmul.f32 %v504, %v512
        %v525 = vld [vmem:[%s4] sm:$0xf]
        %v526 = vld [vmem:[%s4 + $0x4] sm:$0xf]
        %v527 = vpack.c.bf16 %v513, %v513
        %v528 = vpack.c.bf16 %v514, %v514
        %v529 = vpack.c.bf16 %v515, %v515
        %v530 = vpack.c.bf16 %v516, %v516
        %v531 = vpack.c.bf16 %v517, %v517
        %v532 = vpack.c.bf16 %v518, %v518
        %v533 = vpack.c.bf16 %v519, %v519
        %v534 = vpack.c.bf16 %v520, %v520
        %v535 = vpack.c.bf16 %v521, %v521
        %v536 = vpack.c.bf16 %v522, %v522
        %v537 = vpack.c.bf16 %v523, %v523
        %v538 = vpack.c.bf16 %v524, %v524
        %v539 = vld [vmem:[%s5] sm:$0xff]
        %v540 = vld [vmem:[%s5 + $0x8] sm:$0xff]
        %542 = vset.pattern.permute.xlu0 0
        %543 = vperm.xlu0 %542, %v539
        %v544 = vpop.permute.xlu0 %543
        %547 = vset.pattern.permute.xlu0 0
        %548 = vperm.xlu0 %547, %v540
        %v549 = vpop.permute.xlu0 %548
        %v553 = vunpack.c.l.b16 %v525
        %v554 = vunpack.c.l.b16 %v526
        %v555 = vpack.c.b16 %v554, %v553
        %v568 = vunpack.c.l.b16 %v527
        %v569 = vunpack.c.l.b16 %v528
        %v570 = vunpack.c.l.b16 %v529
        %v571 = vunpack.c.l.b16 %v530
        %v572 = vunpack.c.l.b16 %v531
        %v573 = vunpack.c.l.b16 %v532
        %v574 = vunpack.c.l.b16 %v533
        %v575 = vunpack.c.l.b16 %v534
        %v576 = vunpack.c.l.b16 %v535
        %v577 = vunpack.c.l.b16 %v536
        %v578 = vunpack.c.l.b16 %v537
        %v579 = vunpack.c.l.b16 %v538
        %v580 = vrot.slane %v569, 7
        %vm581 = vcmask 1041409
        %v582 = vsel %vm581, %v580, %v568
        %v583 = vrot.slane %v570, 6
        %vm584 = vcmask 1042434
        %v585 = vsel %vm584, %v583, %v582
        %v586 = vrot.slane %v571, 5
        %vm587 = vcmask 1043459
        %v588 = vsel %vm587, %v586, %v585
        %v589 = vrot.slane %v572, 4
        %vm590 = vcmask 1044484
        %v591 = vsel %vm590, %v589, %v588
        %v592 = vrot.slane %v573, 3
        %vm593 = vcmask 1045509
        %v594 = vsel %vm593, %v592, %v591
        %v595 = vrot.slane %v574, 2
        %vm596 = vcmask 1046534
        %v597 = vsel %vm596, %v595, %v594
        %v598 = vrot.slane %v575, 1
        %vm599 = vcmask 1047559
        %v600 = vsel %vm599, %v598, %v597
        %v601 = vrot.slane %v577, 7
        %v602 = vsel %vm581, %v601, %v576
        %v603 = vrot.slane %v578, 6
        %v604 = vsel %vm584, %v603, %v602
        %v605 = vrot.slane %v579, 5
        %v606 = vsel %vm587, %v605, %v604
        %v607 = vpack.c.b16 %v606, %v600
        %vm608 = vcmask 97280
        %v610 = vsel %vm608, %v555, 0
        %vm612 = vcmask 1045504
        %v614 = vsel %vm612, %v607, 0
        %616 = vmatprep.subr.bf16.mxu0 0
        %617 = vmatpush1.bf16.msra.mxu0 0
        %618 = vmatprep.subr.bf16.mxu0 0
        %619 = vmatpush1.bf16.msra.mxu0 0
        %620 = vmatprep.subr.bf16.mxu0 0
        %621 = vmatpush1.bf16.msra.mxu0 0
        %622 = vmatprep.subr.bf16.mxu0 0
        %623 = vmatpush1.bf16.msra.mxu0 0
        %624 = vmatprep.subr.bf16.mxu0 0
        %625 = vmatpush1.bf16.msra.mxu0 0
        %626 = vmatprep.subr.bf16.mxu0 0
        %627 = vmatpush1.bf16.msra.mxu0 0
        %628 = vmatprep.subr.bf16.mxu0 0
        %629 = vmatpush1.bf16.msra.mxu0 0
        %630 = vmatprep.subr.bf16.mxu0 0
        %631 = vmatpush1.bf16.msra.mxu0 %v614
        %632 = vmatprep.subr.bf16.mxu0 0
        %633 = vmatpush2.bf16.msra.mxu0 0
        %634 = vmatprep.subr.bf16.mxu0 0
        %635 = vmatpush2.bf16.msra.mxu0 0
        %636 = vmatprep.subr.bf16.mxu0 0
        %637 = vmatpush2.bf16.msra.mxu0 0
        %638 = vmatprep.subr.bf16.mxu0 0
        %639 = vmatpush2.bf16.msra.mxu0 0
        %640 = vmatprep.subr.bf16.mxu0 0
        %641 = vmatpush2.bf16.msra.mxu0 0
        %642 = vmatprep.subr.bf16.mxu0 0
        %643 = vmatpush2.bf16.msra.mxu0 0
        %644 = vmatprep.subr.bf16.mxu0 0
        %645 = vmatpush2.bf16.msra.mxu0 0
        %646 = vmatprep.subr.bf16.mxu0 0
        %647 = vmatpush2.bf16.msra.mxu0 0
        %648 = vmatprep.mubr.bf16.mxu0 0
        %649 = vmatmul.mubr.bf16.gmra.mxu0 %v610
        %v650 = vpop.f32.mrf.mxu0
        %v651 = vadd.f32 %v544, %v650
        %v652 = vpop.f32.mrf.mxu0
        %v653 = vpop.f32.mrf.mxu0
        %v654 = vadd.f32 %v549, %v653
        %v655 = vpop.f32.mrf.mxu0
        %656 = vdwg.mxu0
        %v657 = vmax.f32 %v651, 0.0
        %v658 = vmax.f32 %v654, 0.0
        %659 = vst [vmem:[%s384] sm:$0xff] %v657
        %660 = vst [vmem:[%s384 + $0x8] sm:$0xff] %v658
        %s661 = sand.u32 %s202, 1
        %s662 = scalar_lea.sflag [#allocation4], %s661
        %s663 = sand.u32 %s202, 1
        %s664 = smul.addr %s663, 16
        %s665 = scalar_lea.vmem [#allocation8], %s664
        // Predicated region
        $region57: #{tpu_custom_call.1} parent=43 // pred_check
          %p666 = pneg %p212
        $region58: #{tpu_custom_call.1} parent=43 // pred_check_branch
          %668 = sbr.rel (%p666) target = $region60
        $region59: #{tpu_custom_call.1} parent=43 // pred_region
          %s670 = ssub.s32 256, 256
          %671 = vsyncadd %s662, %s670
          %s672 = smul.addr %s30, 2
          %s673 = sadd.s32 %s31, %s672
          %s674 = smul.addr %s673, 128
          %s675 = scalar_lea.hbm %s6, %s674
          %s676 = sshll.u32 %s665, 4
          %s677 = int_to_ptr.vmem [resolvable:$true] %s676
          %682 = dma.vmem_to_hbm [thread:$0]  %s677, 256, %s675, %s662, 128, 128, 8
        $region60: #{tpu_custom_call.1} parent=43 // pred_fallthru
          _
      $region44: #{tpu_custom_call.1} parent=5 // pred_fallthru
        _
      %p683 = scmp.le.s32.totalorder 2, %s21
      // Predicated region
      $region61: #{tpu_custom_call.1} parent=5 // pred_check
        %p684 = pneg %p683
      $region62: #{tpu_custom_call.1} parent=5 // pred_check_branch
        %686 = sbr.rel (%p684) target = $region64
      $region63: #{tpu_custom_call.1} parent=5 // pred_region
        %s687 = ssub.s32 %s21, 2
        // Predicated region
        $region65: #{tpu_custom_call.1} parent=63 // pred_check
          %p688 = pneg %p218
        $region66: #{tpu_custom_call.1} parent=63 // pred_check_branch
          %690 = sbr.rel (%p688) target = $region68
        $region67: #{tpu_custom_call.1} parent=63 // pred_region
          %s691 = sand.u32 %s203, 1
          %s692 = scalar_lea.sflag [#allocation4], %s691
          %s693 = sand.u32 %s203, 1
          %s694 = smul.addr %s693, 16
          %s695 = scalar_lea.vmem [#allocation8], %s694
          %696 = dma.done %s692, 256
        $region68: #{tpu_custom_call.1} parent=63 // pred_fallthru
          _
      $region64: #{tpu_custom_call.1} parent=5 // pred_fallthru
        _
    $region6: #{tpu_custom_call.1} parent=1 // loop_footer
      %s25 = sadd.s32 1, %s21
    $region7: #{tpu_custom_call.1} parent=1 // loop_footer_branch
      %20 = sbr.rel target = $region3
    $region8: #{tpu_custom_call.1} parent=1 // loop_exit
      _
    %697 = vsyncpa [#allocation3], 1
    %s698 = scalar_lea.sflag [#allocation3], 1
    %699 = vsyncpa %s698, 1
    %700 = vsyncpa [#allocation6], 1
    %s701 = scalar_lea.sflag [#allocation6], 1
    %702 = vsyncpa %s701, 1
    %703 = vsyncpa [#allocation4], 1
    %s704 = scalar_lea.sflag [#allocation4], 1
    %705 = vsyncpa %s704, 1

</llo_original>
